<compile_context>
chip_gen: v6e
topology: v6e:2x2x1
jax: 0.10.0
libtpu: 0.0.40
codegen_flags: <defaults>
</compile_context>

<pallas_src>
import functools

import jax
import jax.numpy as jnp
from jax.experimental import pallas as pl
from jax.experimental.pallas import tpu as pltpu


# ----------------------------------------------------------------------------
# Plain-JAX glue: sampling / grouping (data-dependent gather & sort).
# ----------------------------------------------------------------------------
def get_dists(points1, points2):
    d = (jnp.sum(points1 ** 2, axis=-1)[:, :, None]
         + jnp.sum(points2 ** 2, axis=-1)[:, None, :]
         - 2.0 * jnp.einsum("bmc,bnc->bmn", points1, points2))
    d = jnp.where(d < 0, 1e-7, d)
    return jnp.sqrt(d).astype(jnp.float32)


def fps(xyz, M):
    B, N, _ = xyz.shape
    # TODO(synk): torch fps starts from torch.randint(0, N, (B,)); we use a
    # deterministic start index (0 per batch) for reproducibility.
    inds = jnp.zeros((B,), dtype=jnp.int32)
    dists = jnp.full((B, N), 1e5, dtype=jnp.float32)
    batch = jnp.arange(B)
    centroids = []
    for _ in range(M):
        centroids.append(inds)
        cur = xyz[batch, inds]                              # (B, 3)
        cur_d = get_dists(cur[:, None, :], xyz)[:, 0, :]    # (B, N)
        dists = jnp.minimum(dists, cur_d)
        inds = jnp.argmax(dists, axis=1).astype(jnp.int32)
    return jnp.stack(centroids, axis=1)                     # (B, M)


def gather_points(points, inds):
    B = points.shape[0]
    if inds.ndim == 2:
        return points[jnp.arange(B)[:, None], inds]
    return points[jnp.arange(B)[:, None, None], inds]


def ball_query(xyz, new_xyz, radius, K):
    B, N, _ = xyz.shape
    M = new_xyz.shape[1]
    grouped_inds = jnp.broadcast_to(jnp.arange(N, dtype=jnp.int32), (B, M, N))
    dists = get_dists(new_xyz, xyz)
    grouped_inds = jnp.where(dists > radius, N, grouped_inds)
    grouped_inds = jnp.sort(grouped_inds, axis=-1)[:, :, :K]
    min_inds = jnp.broadcast_to(grouped_inds[:, :, 0:1], grouped_inds.shape)
    grouped_inds = jnp.where(grouped_inds == N, min_inds, grouped_inds)
    return grouped_inds


def sample_and_group(xyz, points, M, radius, K, use_xyz=True):
    new_xyz = gather_points(xyz, fps(xyz, M))
    grouped_inds = ball_query(xyz, new_xyz, radius, K)
    grouped_xyz = gather_points(xyz, grouped_inds) - new_xyz[:, :, None, :]
    if points is not None:
        grouped_points = gather_points(points, grouped_inds)
        if use_xyz:
            new_points = jnp.concatenate(
                [grouped_xyz.astype(jnp.float32),
                 grouped_points.astype(jnp.float32)], axis=-1)
        else:
            new_points = grouped_points
    else:
        new_points = grouped_xyz
    return new_xyz, new_points, grouped_inds, grouped_xyz


def sample_and_group_all(xyz, points, use_xyz=True):
    B, M, C = xyz.shape
    new_xyz = jnp.zeros((B, 1, C), dtype=xyz.dtype)
    grouped_inds = jnp.broadcast_to(jnp.arange(M, dtype=jnp.int32), (B, 1, M))
    grouped_xyz = xyz.reshape(B, 1, M, C)
    if points is not None:
        if use_xyz:
            new_points = jnp.concatenate(
                [xyz.astype(jnp.float32), points.astype(jnp.float32)], axis=2)
        else:
            new_points = points
        new_points = new_points[:, None, :, :]
    else:
        new_points = grouped_xyz
    return new_xyz, new_points, grouped_inds, grouped_xyz


# ----------------------------------------------------------------------------
# Small helpers
# ----------------------------------------------------------------------------
def _round_up(x, m):
    return (x + m - 1) // m * m


def _quant_scale_zero(lo, hi):
    """Quantize.apply scale / zero-point (8-bit), guarded against s == 0."""
    s = jnp.maximum((hi - lo) / 255.0, 1e-12)
    z = -(lo / s) - 128.0
    return s, z


def _device_kind():
    try:
        return jax.devices()[0].device_kind.lower()
    except Exception:
        return ""


def _device_vmem_plan():
    """(vmem_limit_bytes, per-call tile VMEM budget) derived from the part."""
    try:
        cap = int(pltpu.get_tpu_info().vmem_capacity_bytes)
    except Exception:
        cap = 64 << 20
    if cap >= (100 << 20):            # v5e / v6e: 128 MiB physical VMEM
        return 64 << 20, 24 << 20
    return 48 << 20, 16 << 20         # v7x: 64 MiB physical VMEM


def _matmul_dtype(tile_rows, cin_b):
    """bf16 is exact for the [-128,127] integer grid on every generation; use
    the native int8 MXU path on v5e/v6e when sublane packing allows it (v7x
    MXU has no integer path and fp8 cannot represent this grid exactly)."""
    kind = _device_kind()
    if (("v5" in kind or "v6" in kind)
            and tile_rows % 32 == 0 and cin_b % 32 == 0):
        return jnp.int8
    return jnp.bfloat16


def _pick_group_tile(BM, K, *, row_align, max_rows, group_align=1):
    """Pick G (groups of K rows per grid step) with G | BM.  Prefers the
    largest legal tile that still leaves >= 2 grid steps (v7x megacore); the
    whole-tensor tile (G == BM) is always a legal fallback."""
    cands = []
    for g in range(1, BM + 1):
        if BM % g:
            continue
        if g == BM:
            cands.append(g)
            continue
        if (g * K) % row_align == 0 and g % group_align == 0:
            cands.append(g)
    fits = [g for g in cands if g * K <= max_rows] or [min(cands)]
    multi = [g for g in fits if BM // g >= 2]
    return max(multi) if multi else max(fits)


def _weight_spec(cin_b, cout_p, nbytes):
    """Resident weight tile (constant index map).  Large weights are single
    buffered so the saved VMEM can go to bigger row tiles (v7x)."""
    if nbytes >= (1 << 20):
        try:
            return pl.BlockSpec((cin_b, cout_p), lambda i: (0, 0),
                                pipeline_mode=pl.Buffered(1))
        except Exception:
            pass
    return pl.BlockSpec((cin_b, cout_p), lambda i: (0, 0))


# ----------------------------------------------------------------------------
# Pallas kernels
# ----------------------------------------------------------------------------
def _fused_layer_kernel(floor_ref, scale_ref, shift_ref, x_ref, w_ref,
                        y_ref, tsum_ref, tm2_ref, tmin_ref, tmax_ref,
                        *, int8_path, inv_rows):
    """(BN + ReLU +) quantize folded into a single per-channel affine, MXU
    matmul with the pre-quantized weight, then per-tile BatchNorm statistics
    (shifted sums for a stable variance) and per-channel min/max of y."""
    floor = floor_ref[0, 0]
    x_q = jnp.round(jnp.maximum(
        x_ref[...] * scale_ref[...] + shift_ref[...], floor))
    if int8_path:
        x_q = jnp.clip(x_q, -128.0, 127.0).astype(jnp.int8)
        y = jnp.dot(x_q, w_ref[...],
                    preferred_element_type=jnp.int32).astype(jnp.float32)
    else:
        # The integer grid [-128,127] is exact in bf16; products and sums stay
        # exact in the f32 MXU accumulator for cin up to ~1024.
        y = jnp.dot(x_q.astype(jnp.bfloat16), w_ref[...],
                    preferred_element_type=jnp.float32)
    y_ref[...] = y
    c = y.shape[-1]
    tsum = jnp.sum(y, axis=0, keepdims=True)            # (1, c)
    d = y - tsum * inv_rows                              # center on tile mean
    tsum_ref[...] = tsum.reshape(1, 1, c)
    tm2_ref[...] = jnp.sum(d * d, axis=0, keepdims=True).reshape(1, 1, c)
    tmin_ref[...] = jnp.min(y, axis=0, keepdims=True).reshape(1, 1, c)
    tmax_ref[...] = jnp.max(y, axis=0, keepdims=True).reshape(1, 1, c)


def _bn_relu_pool_kernel(scale_ref, shift_ref, y_ref, o_ref, *, k, pooling):
    """BN affine + ReLU + pool over the K neighbours (rows are K-minor)."""
    z = jnp.maximum(y_ref[...] * scale_ref[...] + shift_ref[...], 0.0)
    c = z.shape[-1]
    zg = z.reshape(-1, k, c)
    if pooling == "avg":
        o_ref[...] = jnp.mean(zg, axis=1)
    else:
        o_ref[...] = jnp.max(zg, axis=1)


# ----------------------------------------------------------------------------
# pallas_call wrappers
# ----------------------------------------------------------------------------
def _fused_layer(floor, scale, shift, x, w_q, *, R, tile_rows, n_tiles,
                 cin_b, cout_p, int8_path, cparams):
    kernel = functools.partial(_fused_layer_kernel, int8_path=int8_path,
                               inv_rows=1.0 / tile_rows)
    w_bytes = cin_b * cout_p * (1 if int8_path else 2)
    cost = pl.CostEstimate(flops=2 * R * cin_b * cout_p, transcendentals=0,
                           bytes_accessed=R * (cin_b + cout_p) * 4 + w_bytes)
    stat_shape = jax.ShapeDtypeStruct((n_tiles, 1, cout_p), jnp.float32)
    stat_spec = pl.BlockSpec((1, 1, cout_p), lambda i: (i, 0, 0))
    return pl.pallas_call(
        kernel,
        grid=(n_tiles,),
        in_specs=[
            pl.BlockSpec(memory_space=pltpu.MemorySpace.SMEM),     # relu floor
            pl.BlockSpec((1, cin_b), lambda i: (0, 0)),            # folded scale
            pl.BlockSpec((1, cin_b), lambda i: (0, 0)),            # folded shift
            pl.BlockSpec((tile_rows, cin_b), lambda i: (i, 0)),    # activation
            _weight_spec(cin_b, cout_p, w_bytes),                  # resident W
        ],
        out_specs=[
            pl.BlockSpec((tile_rows, cout_p), lambda i: (i, 0)),   # y tile
            stat_spec, stat_spec, stat_spec, stat_spec,
        ],
        out_shape=[jax.ShapeDtypeStruct((R, cout_p), jnp.float32),
                   stat_shape, stat_shape, stat_shape, stat_shape],
        compiler_params=cparams,
        cost_estimate=cost,
    )(floor, scale, shift, x, w_q)


def _bn_relu_pool(y, scale, shift, *, BM, K, g_rows, n_tiles, cout_p, pooling,
                  cparams):
    kernel = functools.partial(_bn_relu_pool_kernel, k=K, pooling=pooling)
    return pl.pallas_call(
        kernel,
        grid=(n_tiles,),
        in_specs=[
            pl.BlockSpec((1, cout_p), lambda i: (0, 0)),
            pl.BlockSpec((1, cout_p), lambda i: (0, 0)),
            pl.BlockSpec((g_rows * K, cout_p), lambda i: (i, 0)),
        ],
        out_specs=pl.BlockSpec((g_rows, cout_p), lambda i: (i, 0)),  # lane-dense
        out_shape=jax.ShapeDtypeStruct((BM, cout_p), jnp.float32),
        compiler_params=cparams,
    )(scale, shift, y)


# ----------------------------------------------------------------------------
# Backbone: per layer QuantizeConv2d(1x1) + BatchNorm2d(batch stats) + ReLU,
# then pool over the K neighbours.  One fused pallas_call per layer.
# ----------------------------------------------------------------------------
def pointnet_sa_backbone(new_points, weights, gammas, betas, *, pooling="max",
                         eps=1e-5):
    """new_points: (B, M, K, Cin); returns (B, M, mlp[-1])."""
    B, M, K, Cin = (int(d) for d in new_points.shape)
    BM = B * M
    R = BM * K
    mlp = [int(w.shape[1]) for w in weights]
    n_layers = len(mlp)
    c_real = [Cin] + mlp
    # Layer-0 input keeps its real (tiny) channel count -> real HBM bytes only;
    # every layer output is padded to a 128-lane multiple (zero weight cols).
    c_buf = [Cin] + [_round_up(c, 128) for c in mlp]

    vmem_limit, tile_budget = _device_vmem_plan()
    cparams = pltpu.CompilerParams(dimension_semantics=("parallel",),
                                   vmem_limit_bytes=vmem_limit)

    # K-minor row layout: (b, m)-major rows with the K neighbours consecutive.
    x = new_points.reshape(R, Cin).astype(jnp.float32)

    # Layer-0 quantizer (plain Quantize.apply, no preceding ReLU).
    x_min = jnp.min(x)
    x_max = jnp.max(x)
    s_x, z_x = _quant_scale_zero(x_min, x_max)
    inv_s = 1.0 / s_x
    scale_f = jnp.broadcast_to(inv_s, (1, Cin)).astype(jnp.float32)
    shift_f = jnp.broadcast_to(z_x, (1, Cin)).astype(jnp.float32)
    floor = jnp.full((1, 1), -1e30, jnp.float32)     # no ReLU clamp for layer 0

    y = None
    bn_scale = bn_shift = None
    for i in range(n_layers):
        cin_r, cout_r = c_real[i], c_real[i + 1]
        cin_b, cout_p = c_buf[i], c_buf[i + 1]

        # Per-layer tile sizing: largest legal row tile inside the budget,
        # capped so the "parallel" grid keeps >= 2 steps for v7x's two cores.
        w_guess = cin_b * cout_p * 2
        max_rows = max(8, (tile_budget - 2 * w_guess) // (16 * (cin_b + cout_p)))
        g = _pick_group_tile(BM, K, row_align=8, max_rows=max_rows)
        tile_rows = g * K
        n_tiles = BM // g
        mat_dtype = _matmul_dtype(tile_rows, cin_b)
        int8_path = mat_dtype == jnp.int8

        # --- weight quantization (Quantize.apply) hoisted out of the kernel --
        w = weights[i].astype(jnp.float32)               # (cin, cout)
        s_w, z_w = _quant_scale_zero(jnp.min(w), jnp.max(w))
        w_q = jnp.round(w / s_w + z_w)
        if int8_path:
            w_q = jnp.clip(w_q, -128.0, 127.0)
        w_q = jnp.pad(w_q, ((0, cin_b - cin_r), (0, cout_p - cout_r)))
        w_q = w_q.astype(mat_dtype)                      # zero padded rows/cols

        # --- fused: BN(prev)+ReLU+quantize -> matmul -> partial BN stats ------
        y, tsum, tm2, tmin, tmax = _fused_layer(
            floor, scale_f, shift_f, x, w_q, R=R, tile_rows=tile_rows,
            n_tiles=n_tiles, cin_b=cin_b, cout_p=cout_p,
            int8_path=int8_path, cparams=cparams)

        # --- BatchNorm2d batch statistics: Chan's combine of per-tile shifted
        #     sums (numerically matches the two-pass centered variance). ------
        tsum2 = tsum[:, 0, :]
        tmean = tsum2 / tile_rows
        mu = jnp.sum(tsum2, axis=0) / R
        m2 = (jnp.sum(tm2[:, 0, :], axis=0)
              + tile_rows * jnp.sum((tmean - mu) ** 2, axis=0))
        var = jnp.maximum(m2 / R, 0.0)

        gamma = jnp.pad(gammas[i].astype(jnp.float32), (0, cout_p - cout_r))
        beta = jnp.pad(betas[i].astype(jnp.float32), (0, cout_p - cout_r))
        bn_scale = gamma * jax.lax.rsqrt(var + eps)      # 0 on padded channels
        bn_shift = beta - mu * bn_scale

        if i < n_layers - 1:
            # Next layer's quantizer range, derived analytically (exact) from
            # per-channel min/max of y: relu(a*y+b) is monotone in y.
            ymin = jnp.min(tmin[:, 0, :], axis=0)
            ymax = jnp.max(tmax[:, 0, :], axis=0)
            e0 = bn_scale * ymin + bn_shift
            e1 = bn_scale * ymax + bn_shift
            lo = jnp.maximum(jnp.minimum(e0, e1), 0.0)[:cout_r]
            hi = jnp.maximum(jnp.maximum(e0, e1), 0.0)[:cout_r]
            s_x, z_x = _quant_scale_zero(jnp.min(lo), jnp.max(hi))
            inv_s = 1.0 / s_x
            # Fold BN + quantizer through the ReLU (inv_s > 0):
            #   x_q = round(max(y * scale' + shift', z_x))
            scale_f = (bn_scale * inv_s).reshape(1, cout_p)
            shift_f = (bn_shift * inv_s + z_x).reshape(1, cout_p)
            floor = jnp.reshape(z_x, (1, 1)).astype(jnp.float32)
            x = y           # post-BN/ReLU/quantized activation never hits HBM

    # Final layer's BN + ReLU + max/avg pool over the K neighbours.
    cout_p = c_buf[-1]
    max_rows = max(8, tile_budget // (12 * cout_p))
    g = _pick_group_tile(BM, K, row_align=8, max_rows=max_rows, group_align=8)
    pooled = _bn_relu_pool(
        y, bn_scale.reshape(1, cout_p), bn_shift.reshape(1, cout_p),
        BM=BM, K=K, g_rows=g, n_tiles=BM // g, cout_p=cout_p,
        pooling=pooling, cparams=cparams)
    return pooled[:, :mlp[-1]].reshape(B, M, mlp[-1])


def pointnet_sa_module_forward(xyz, points, *, M, radius, K, weights, gammas,
                               betas, group_all=False, use_xyz=True,
                               pooling="max"):
    if group_all:
        new_xyz, new_points, _, _ = sample_and_group_all(xyz, points, use_xyz)
    else:
        new_xyz, new_points, _, _ = sample_and_group(
            xyz, points, M, radius, K, use_xyz)
    new_feats = pointnet_sa_backbone(new_points, weights, gammas, betas,
                                     pooling=pooling)
    return new_xyz, new_feats


# ----------------------------------------------------------------------------
# Pure-JAX reference of the backbone (for a numerical self-check).
# ----------------------------------------------------------------------------
def backbone_reference(new_points, weights, gammas, betas, eps=1e-5,
                       pooling="max"):
    B, M, K, Cin = new_points.shape
    x = new_points.reshape(B * M * K, Cin).astype(jnp.float32)
    for w, g, b in zip(weights, gammas, betas):
        s_x, z_x = _quant_scale_zero(jnp.min(x), jnp.max(x))
        x_q = jnp.round(x / s_x + z_x)
        wf = w.astype(jnp.float32)
        s_w, z_w = _quant_scale_zero(jnp.min(wf), jnp.max(wf))
        w_q = jnp.round(wf / s_w + z_w)
        y = x_q @ w_q
        mean = jnp.mean(y, axis=0)
        var = jnp.mean((y - mean) ** 2, axis=0)
        x = jnp.maximum((y - mean) * jax.lax.rsqrt(var + eps) * g + b, 0.0)
    z = x.reshape(B * M, K, -1)
    pooled = jnp.mean(z, axis=1) if pooling == "avg" else jnp.max(z, axis=1)
    return pooled.reshape(B, M, -1)


if __name__ == "__main__":
    key = jax.random.PRNGKey(0)
    B, N, C_feat = 2, 64, 4
    M, radius, K = 16, 0.35, 8
    mlp = [32, 32, 64]
    use_xyz = True
    in_channels = C_feat + 3 if use_xyz else C_feat

    k_xyz, k_pts, k_w = jax.random.split(key, 3)
    xyz = jax.random.uniform(k_xyz, (B, N, 3), dtype=jnp.float32)
    points = jax.random.normal(k_pts, (B, N, C_feat), dtype=jnp.float32)

    # Deterministic parameter init.  Conv weights stored as (Cin, Cout), i.e.
    # the PyTorch Conv2d weight (Cout, Cin, 1, 1) squeezed and transposed.
    weights, gammas, betas = [], [], []
    cin = in_channels
    for cout in mlp:
        k_w, k_sub = jax.random.split(k_w)
        weights.append(0.1 * jax.random.normal(k_sub, (cin, cout),
                                               dtype=jnp.float32))
        gammas.append(jnp.ones((cout,), jnp.float32))   # BatchNorm2d default
        betas.append(jnp.zeros((cout,), jnp.float32))
        cin = cout

    new_xyz, new_feats = pointnet_sa_module_forward(
        xyz, points, M=M, radius=radius, K=K,
        weights=weights, gammas=gammas, betas=betas,
        group_all=False, use_xyz=use_xyz)
    (new_xyz, new_feats) = jax.block_until_ready((new_xyz, new_feats))

    assert new_xyz.shape == (B, M, 3)
    assert new_feats.shape == (B, M, mlp[-1])
    assert bool(jnp.all(jnp.isfinite(new_feats)))

    # Numerical self-check of the fused Pallas backbone against plain JAX.
    _, new_points_ref, _, _ = sample_and_group(xyz, points, M, radius, K,
                                               use_xyz)
    ref = backbone_reference(new_points_ref, weights, gammas, betas)
    assert bool(jnp.allclose(new_feats, ref, rtol=1e-2, atol=1e-2))

    print("KERNEL_OK")
</pallas_src>

<mosaic_0001>
module attributes {stable_mosaic.version = 11 : i64} {
  func.func @_fused_layer_kernel(%arg0: i32, %arg1: memref<1x1xf32, #tpu.memory_space<smem>>, %arg2: memref<1x7xf32, #tpu.memory_space<vmem>>, %arg3: memref<1x7xf32, #tpu.memory_space<vmem>>, %arg4: memref<128x7xf32, #tpu.memory_space<vmem>>, %arg5: memref<7x128xbf16, #tpu.memory_space<vmem>>, %arg6: memref<128x128xf32, #tpu.memory_space<vmem>>, %arg7: memref<1x1x128xf32, #tpu.memory_space<vmem>>, %arg8: memref<1x1x128xf32, #tpu.memory_space<vmem>>, %arg9: memref<1x1x128xf32, #tpu.memory_space<vmem>>, %arg10: memref<1x1x128xf32, #tpu.memory_space<vmem>>) attributes {dimension_semantics = [#tpu.dimension_semantics<parallel>], iteration_bounds = array<i64: 2>, scalar_prefetch = 0 : i64, scratch_operands = 0 : i64, tpu.core_type = #tpu.core_type<tc>, window_params = [{transform_indices = @transform_0, window_bounds = array<i64: 1, 1>}, {pipeline_mode = #tpu.pipeline_mode<synchronous>, transform_indices = @transform_1, window_bounds = array<i64: 1, 7>}, {pipeline_mode = #tpu.pipeline_mode<synchronous>, transform_indices = @transform_2, window_bounds = array<i64: 1, 7>}, {transform_indices = @transform_3, window_bounds = array<i64: 128, 7>}, {pipeline_mode = #tpu.pipeline_mode<synchronous>, transform_indices = @transform_4, window_bounds = array<i64: 7, 128>}, {transform_indices = @transform_5, window_bounds = array<i64: 128, 128>}, {transform_indices = @transform_6, window_bounds = array<i64: 1, 1, 128>}, {transform_indices = @transform_7, window_bounds = array<i64: 1, 1, 128>}, {transform_indices = @transform_8, window_bounds = array<i64: 1, 1, 128>}, {transform_indices = @transform_9, window_bounds = array<i64: 1, 1, 128>}]} {
    %c0 = arith.constant 0 : index
    %c0_0 = arith.constant 0 : index
    %0 = memref.load %arg1[%c0, %c0_0] : memref<1x1xf32, #tpu.memory_space<smem>>
    %c0_1 = arith.constant 0 : index
    %c0_2 = arith.constant 0 : index
    %1 = vector.load %arg4[%c0_1, %c0_2] : memref<128x7xf32, #tpu.memory_space<vmem>>, vector<128x7xf32>
    %c0_3 = arith.constant 0 : index
    %c0_4 = arith.constant 0 : index
    %2 = vector.load %arg2[%c0_3, %c0_4] : memref<1x7xf32, #tpu.memory_space<vmem>>, vector<1x7xf32>
    %3 = vector.broadcast %2 : vector<1x7xf32> to vector<128x7xf32>
    %4 = arith.mulf %1, %3 : vector<128x7xf32>
    %c0_5 = arith.constant 0 : index
    %c0_6 = arith.constant 0 : index
    %5 = vector.load %arg3[%c0_5, %c0_6] : memref<1x7xf32, #tpu.memory_space<vmem>>, vector<1x7xf32>
    %6 = vector.broadcast %5 : vector<1x7xf32> to vector<128x7xf32>
    %7 = arith.addf %4, %6 : vector<128x7xf32>
    %8 = vector.broadcast %0 : f32 to vector<128x7xf32>
    %9 = arith.maximumf %7, %8 : vector<128x7xf32>
    %10 = math.roundeven %9 : vector<128x7xf32>
    %11 = arith.truncf %10 : vector<128x7xf32> to vector<128x7xbf16>
    %c0_7 = arith.constant 0 : index
    %c0_8 = arith.constant 0 : index
    %12 = vector.load %arg5[%c0_7, %c0_8] : memref<7x128xbf16, #tpu.memory_space<vmem>>, vector<7x128xbf16>
    %cst = arith.constant dense<0.000000e+00> : vector<128x128xf32>
    %13 = tpu.matmul %11, %12, %cst {dimension_numbers = #tpu.dot_dimension_numbers<[1], [0], [0], [1], [0, 0, 1, 1], [], []>} : vector<128x7xbf16>, vector<7x128xbf16>, vector<128x128xf32> -> vector<128x128xf32>
    %c0_9 = arith.constant 0 : index
    %c0_10 = arith.constant 0 : index
    %14 = vector.load %arg6[%c0_9, %c0_10] : memref<128x128xf32, #tpu.memory_space<vmem>>, vector<128x128xf32>
    tpu.vector_store %arg6[%c0_9, %c0_10], %13 {strides = array<i32>} : memref<128x128xf32, #tpu.memory_space<vmem>>, vector<128x128xf32>,
    %cst_11 = arith.constant dense<0.000000e+00> : vector<128xf32>
    %15 = vector.multi_reduction <add>, %13, %cst_11 [0] : vector<128x128xf32> to vector<128xf32>
    %16 = vector.shape_cast %15 : vector<128xf32> to vector<1x128xf32>
    %cst_12 = arith.constant 7.812500e-03 : f32
    %17 = vector.broadcast %cst_12 : f32 to vector<1x128xf32>
    %18 = arith.mulf %16, %17 : vector<1x128xf32>
    %19 = vector.broadcast %18 : vector<1x128xf32> to vector<128x128xf32>
    %20 = arith.subf %13, %19 : vector<128x128xf32>
    %21 = vector.shape_cast %16 : vector<1x128xf32> to vector<1x1x128xf32>
    %c0_13 = arith.constant 0 : index
    %c0_14 = arith.constant 0 : index
    %c0_15 = arith.constant 0 : index
    %22 = vector.load %arg7[%c0_13, %c0_14, %c0_15] : memref<1x1x128xf32, #tpu.memory_space<vmem>>, vector<1x1x128xf32>
    tpu.vector_store %arg7[%c0_13, %c0_14, %c0_15], %21 {strides = array<i32>} : memref<1x1x128xf32, #tpu.memory_space<vmem>>, vector<1x1x128xf32>,
    %23 = arith.mulf %20, %20 : vector<128x128xf32>
    %cst_16 = arith.constant dense<0.000000e+00> : vector<128xf32>
    %24 = vector.multi_reduction <add>, %23, %cst_16 [0] : vector<128x128xf32> to vector<128xf32>
    %25 = vector.shape_cast %24 : vector<128xf32> to vector<1x128xf32>
    %26 = vector.shape_cast %25 : vector<1x128xf32> to vector<1x1x128xf32>
    %c0_17 = arith.constant 0 : index
    %c0_18 = arith.constant 0 : index
    %c0_19 = arith.constant 0 : index
    %27 = vector.load %arg8[%c0_17, %c0_18, %c0_19] : memref<1x1x128xf32, #tpu.memory_space<vmem>>, vector<1x1x128xf32>
    tpu.vector_store %arg8[%c0_17, %c0_18, %c0_19], %26 {strides = array<i32>} : memref<1x1x128xf32, #tpu.memory_space<vmem>>, vector<1x1x128xf32>,
    %cst_20 = arith.constant dense<0x7F800000> : vector<128xf32>
    %28 = vector.multi_reduction <minimumf>, %13, %cst_20 [0] : vector<128x128xf32> to vector<128xf32>
    %29 = vector.shape_cast %28 : vector<128xf32> to vector<1x128xf32>
    %30 = vector.shape_cast %29 : vector<1x128xf32> to vector<1x1x128xf32>
    %c0_21 = arith.constant 0 : index
    %c0_22 = arith.constant 0 : index
    %c0_23 = arith.constant 0 : index
    %31 = vector.load %arg9[%c0_21, %c0_22, %c0_23] : memref<1x1x128xf32, #tpu.memory_space<vmem>>, vector<1x1x128xf32>
    tpu.vector_store %arg9[%c0_21, %c0_22, %c0_23], %30 {strides = array<i32>} : memref<1x1x128xf32, #tpu.memory_space<vmem>>, vector<1x1x128xf32>,
    %cst_24 = arith.constant dense<0xFF800000> : vector<128xf32>
    %32 = vector.multi_reduction <maximumf>, %13, %cst_24 [0] : vector<128x128xf32> to vector<128xf32>
    %33 = vector.shape_cast %32 : vector<128xf32> to vector<1x128xf32>
    %34 = vector.shape_cast %33 : vector<1x128xf32> to vector<1x1x128xf32>
    %c0_25 = arith.constant 0 : index
    %c0_26 = arith.constant 0 : index
    %c0_27 = arith.constant 0 : index
    %35 = vector.load %arg10[%c0_25, %c0_26, %c0_27] : memref<1x1x128xf32, #tpu.memory_space<vmem>>, vector<1x1x128xf32>
    tpu.vector_store %arg10[%c0_25, %c0_26, %c0_27], %34 {strides = array<i32>} : memref<1x1x128xf32, #tpu.memory_space<vmem>>, vector<1x1x128xf32>,
    return
  }
  func.func @transform_0(%arg0: i32) -> (i32, i32) {
    %c0_i32 = arith.constant 0 : i32
    %c0_i32_0 = arith.constant 0 : i32
    %c0_i32_1 = arith.constant 0 : i32
    return %c0_i32, %c0_i32_0 : i32, i32
  }
  func.func @transform_1(%arg0: i32) -> (i32, i32) {
    %c0_i32 = arith.constant 0 : i32
    %c0_i32_0 = arith.constant 0 : i32
    %c0_i32_1 = arith.constant 0 : i32
    return %c0_i32, %c0_i32_0 : i32, i32
  }
  func.func @transform_2(%arg0: i32) -> (i32, i32) {
    %c0_i32 = arith.constant 0 : i32
    %c0_i32_0 = arith.constant 0 : i32
    %c0_i32_1 = arith.constant 0 : i32
    return %c0_i32, %c0_i32_0 : i32, i32
  }
  func.func @transform_3(%arg0: i32) -> (i32, i32) {
    %c0_i32 = arith.constant 0 : i32
    %c0_i32_0 = arith.constant 0 : i32
    return %arg0, %c0_i32 : i32, i32
  }
  func.func @transform_4(%arg0: i32) -> (i32, i32) {
    %c0_i32 = arith.constant 0 : i32
    %c0_i32_0 = arith.constant 0 : i32
    %c0_i32_1 = arith.constant 0 : i32
    return %c0_i32, %c0_i32_0 : i32, i32
  }
  func.func @transform_5(%arg0: i32) -> (i32, i32) {
    %c0_i32 = arith.constant 0 : i32
    %c0_i32_0 = arith.constant 0 : i32
    return %arg0, %c0_i32 : i32, i32
  }
  func.func @transform_6(%arg0: i32) -> (i32, i32, i32) {
    %c0_i32 = arith.constant 0 : i32
    %c0_i32_0 = arith.constant 0 : i32
    %c0_i32_1 = arith.constant 0 : i32
    return %arg0, %c0_i32, %c0_i32_0 : i32, i32, i32
  }
  func.func @transform_7(%arg0: i32) -> (i32, i32, i32) {
    %c0_i32 = arith.constant 0 : i32
    %c0_i32_0 = arith.constant 0 : i32
    %c0_i32_1 = arith.constant 0 : i32
    return %arg0, %c0_i32, %c0_i32_0 : i32, i32, i32
  }
  func.func @transform_8(%arg0: i32) -> (i32, i32, i32) {
    %c0_i32 = arith.constant 0 : i32
    %c0_i32_0 = arith.constant 0 : i32
    %c0_i32_1 = arith.constant 0 : i32
    return %arg0, %c0_i32, %c0_i32_0 : i32, i32, i32
  }
  func.func @transform_9(%arg0: i32) -> (i32, i32, i32) {
    %c0_i32 = arith.constant 0 : i32
    %c0_i32_0 = arith.constant 0 : i32
    %c0_i32_1 = arith.constant 0 : i32
    return %arg0, %c0_i32, %c0_i32_0 : i32, i32, i32
  }
}

</mosaic_0001>

<llo_original>
// kernel: tpu_custom_call.1
$region0: #{tpu_custom_call.1}
  #allocation0 [shape = 'u32[]', space=smem, size = 0x4, offset = 0x4, fixed_abs, tag = 'smem constant byte address 0x4 - core index']
  #allocation1 [shape = 'u32[144,128]{1,0:T(1,128)}', space=vmem, size = 0x12000, scoped, tag = 'internal scratch']
  #allocation2 [shape = 'f32[1,1]{1,0:T(1,128)S(6)}', space=smem, size = 0x200, scoped, tag = 'scoped memory for tpu_custom_call.1']
  %s0 = inlined_call_operand.<no memory space> [shape: f32[1,1], index: 0, kind: input, shape index: {}]
  %s1 = inlined_call_operand.vmem [shape: f32[1,7], index: 1, kind: input, shape index: {}]
  %s2 = inlined_call_operand.vmem [shape: f32[1,7], index: 2, kind: input, shape index: {}]
  %s3 = inlined_call_operand.vmem [shape: f32[256,7], index: 3, kind: input, shape index: {}]
  %s4 = inlined_call_operand.vmem [shape: bf16[7,128], index: 4, kind: input, shape index: {}]
  %s5 = inlined_call_operand.hbm [shape: f32[256,128], index: 5, kind: output, shape index: {0}]
  %s6 = inlined_call_operand.hbm [shape: f32[2,1,128], index: 6, kind: output, shape index: {1}]
  %s7 = inlined_call_operand.hbm [shape: f32[2,1,128], index: 7, kind: output, shape index: {2}]
  %s8 = inlined_call_operand.hbm [shape: f32[2,1,128], index: 8, kind: output, shape index: {3}]
  %s9 = inlined_call_operand.hbm [shape: f32[2,1,128], index: 9, kind: output, shape index: {4}]
  %10 = xla_tuple %s5, %s6, %s7, %s8, %s9
  %s11 = sld [smem:[#allocation0]]
  $region85: #{tpu_custom_call.1} parent=0
    _
  %s13 = ssub.s32 1, %s11
  %s14 = scalar_select 0, %s13, %s11
  %15 = sst [smem:[#allocation2]] %s0
  $region1: #{tpu_custom_call.1} parent=0
    #allocation3 [shape = 'u8[131072]{0}', space=vmem, size = 0x20000, scoped, tag = 'output window, operand 0']
    #allocation4 [shape = 's32[2]{0}', space=sflag, size = 0x8, scoped, tag = 'scoped memory for tpu_custom_call.1']
    #allocation5 [shape = 'u8[1024]{0}', space=vmem, size = 0x400, scoped, tag = 'output window, operand 1']
    #allocation6 [shape = 's32[2]{0}', space=sflag, size = 0x8, scoped, tag = 'scoped memory for tpu_custom_call.1']
    #allocation7 [shape = 'u8[1024]{0}', space=vmem, size = 0x400, scoped, tag = 'output window, operand 2']
    #allocation8 [shape = 'u8[1024]{0}', space=vmem, size = 0x400, scoped, tag = 'output window, operand 3']
    #allocation9 [shape = 's32[2]{0}', space=sflag, size = 0x8, scoped, tag = 'scoped memory for tpu_custom_call.1']
    #allocation10 [shape = 'u8[1024]{0}', space=vmem, size = 0x400, scoped, tag = 'output window, operand 4']
    %16 = vsyncpa [#allocation4], 0
    %s17 = scalar_lea.sflag [#allocation4], 1
    %18 = vsyncpa %s17, 0
    %19 = vsyncpa [#allocation6], 0
    %s20 = scalar_lea.sflag [#allocation6], 1
    %21 = vsyncpa %s20, 0
    %22 = vsyncpa [#allocation9], 0
    %s23 = scalar_lea.sflag [#allocation9], 1
    %24 = vsyncpa %s23, 0
    loop: start=0, step=1, limit=4
    $region2: #{tpu_custom_call.1} parent=1 // loop_pre_header
      _
    $region3: #{tpu_custom_call.1} parent=1 // loop_header
      %s26 = sphi 0, %s30
      %p27 = scmp.ge.s32.totalorder %s26, 4
      %s34 = sphi 0, %s34
      %s36 = sphi 0, %s34
      %s37 = sphi 0, %s36
      %s51 = sphi 0, %s37
      %s55 = sphi 0, %s55
      %s57 = sphi 0, %s55
      %s58 = sphi 0, %s57
      %s72 = sphi 0, %s58
      %s76 = sphi 0, %s76
      %s78 = sphi 0, %s76
      %s79 = sphi 0, %s78
      %s93 = sphi 0, %s79
      %s99 = sphi 0, %s101
      %s102 = sphi 0, %s99
      %s103 = sphi 0, %s102
      %s119 = sphi 0, %s103
      %s123 = sphi 0, %s123
      %s125 = sphi 0, %s123
      %s126 = sphi 0, %s125
      %s140 = sphi 0, %s126
      %s146 = sphi 0, %s148
      %s149 = sphi 0, %s146
      %s150 = sphi 0, %s149
      %s166 = sphi 0, %s150
      %s172 = sphi 0, %s174
      %s175 = sphi 0, %s172
      %s176 = sphi 0, %s175
      %s192 = sphi 0, %s176
      %s198 = sphi 0, %s200
      %s201 = sphi 0, %s198
      %s202 = sphi 0, %s201
      %s218 = sphi 0, %s202
      %s224 = sphi 0, %s226
      %s227 = sphi 0, %s224
      %s228 = sphi 0, %s227
      %s244 = sphi 0, %s228
      %s250 = sphi 0, %s252
      %s253 = sphi 0, %s250
      %s254 = sphi 0, %s253
      %s270 = sphi 0, %s254
    $region4: #{tpu_custom_call.1} parent=1 // loop_header_branch
      %29 = sbr.rel (%p27) target = $region8
    $region5: #{tpu_custom_call.1} parent=1 // loop_body
      %s31 = ssub.s32 %s26, 1
      %s32 = ssub.s32 %s26, 2
      %s33 = sadd.s32 %s26, 1
      %s35 = sadd.s32 %s34, 1
      %p38 = scmp.eq.s32.totalorder %s26, 1
      %p39 = scmp.ne.s32.totalorder %s34, %s36
      %p40 = scmp.eq.s32.totalorder %s26, 0
      %p41 = por %p39, %p40
      %p42 = scmp.ne.s32.totalorder %s34, %s36
      %p43 = scmp.eq.s32.totalorder %s31, 1
      %p44 = por %p42, %p43
      %p45 = scmp.ne.s32.totalorder %s36, %s37
      %p46 = scmp.eq.s32.totalorder %s31, 0
      %p47 = por %p45, %p46
      %p48 = scmp.ne.s32.totalorder %s36, %s37
      %p49 = scmp.eq.s32.totalorder %s32, 1
      %p50 = por %p48, %p49
      %p52 = scmp.ne.s32.totalorder %s37, %s51
      %p53 = scmp.eq.s32.totalorder %s32, 0
      %p54 = por %p52, %p53
      %s56 = sadd.s32 %s55, 1
      %p59 = scmp.eq.s32.totalorder %s26, 1
      %p60 = scmp.ne.s32.totalorder %s55, %s57
      %p61 = scmp.eq.s32.totalorder %s26, 0
      %p62 = por %p60, %p61
      %p63 = scmp.ne.s32.totalorder %s55, %s57
      %p64 = scmp.eq.s32.totalorder %s31, 1
      %p65 = por %p63, %p64
      %p66 = scmp.ne.s32.totalorder %s57, %s58
      %p67 = scmp.eq.s32.totalorder %s31, 0
      %p68 = por %p66, %p67
      %p69 = scmp.ne.s32.totalorder %s57, %s58
      %p70 = scmp.eq.s32.totalorder %s32, 1
      %p71 = por %p69, %p70
      %p73 = scmp.ne.s32.totalorder %s58, %s72
      %p74 = scmp.eq.s32.totalorder %s32, 0
      %p75 = por %p73, %p74
      %s77 = sadd.s32 %s76, 1
      %p80 = scmp.eq.s32.totalorder %s26, 1
      %p81 = scmp.ne.s32.totalorder %s76, %s78
      %p82 = scmp.eq.s32.totalorder %s26, 0
      %p83 = por %p81, %p82
      %p84 = scmp.ne.s32.totalorder %s76, %s78
      %p85 = scmp.eq.s32.totalorder %s31, 1
      %p86 = por %p84, %p85
      %p87 = scmp.ne.s32.totalorder %s78, %s79
      %p88 = scmp.eq.s32.totalorder %s31, 0
      %p89 = por %p87, %p88
      %p90 = scmp.ne.s32.totalorder %s78, %s79
      %p91 = scmp.eq.s32.totalorder %s32, 1
      %p92 = por %p90, %p91
      %p94 = scmp.ne.s32.totalorder %s79, %s93
      %p95 = scmp.eq.s32.totalorder %s32, 0
      %p96 = por %p94, %p95
      %s97 = ssub.s32 %s26, %s33
      %p98 = scmp.eq.s32.totalorder %s97, 0
      %s100 = sadd.s32 %s99, 1
      %s101 = scalar_select %p98, %s99, %s100
      %p104 = pneg %p98
      %p105 = scmp.eq.s32.totalorder %s26, 1
      %p106 = por %p104, %p105
      %p107 = scmp.ne.s32.totalorder %s99, %s102
      %p108 = scmp.eq.s32.totalorder %s26, 0
      %p109 = por %p107, %p108
      %p110 = scmp.ne.s32.totalorder %s99, %s102
      %p111 = scmp.eq.s32.totalorder %s31, 1
      %p112 = por %p110, %p111
      %p113 = scmp.ne.s32.totalorder %s102, %s103
      %p114 = scmp.eq.s32.totalorder %s31, 0
      %p115 = por %p113, %p114
      %p116 = scmp.ne.s32.totalorder %s102, %s103
      %p117 = scmp.eq.s32.totalorder %s32, 1
      %p118 = por %p116, %p117
      %p120 = scmp.ne.s32.totalorder %s103, %s119
      %p121 = scmp.eq.s32.totalorder %s32, 0
      %p122 = por %p120, %p121
      %s124 = sadd.s32 %s123, 1
      %p127 = scmp.eq.s32.totalorder %s26, 1
      %p128 = scmp.ne.s32.totalorder %s123, %s125
      %p129 = scmp.eq.s32.totalorder %s26, 0
      %p130 = por %p128, %p129
      %p131 = scmp.ne.s32.totalorder %s123, %s125
      %p132 = scmp.eq.s32.totalorder %s31, 1
      %p133 = por %p131, %p132
      %p134 = scmp.ne.s32.totalorder %s125, %s126
      %p135 = scmp.eq.s32.totalorder %s31, 0
      %p136 = por %p134, %p135
      %p137 = scmp.ne.s32.totalorder %s125, %s126
      %p138 = scmp.eq.s32.totalorder %s32, 1
      %p139 = por %p137, %p138
      %p141 = scmp.ne.s32.totalorder %s126, %s140
      %p142 = scmp.eq.s32.totalorder %s32, 0
      %p143 = por %p141, %p142
      %s144 = ssub.s32 %s26, %s33
      %p145 = scmp.eq.s32.totalorder %s144, 0
      %s147 = sadd.s32 %s146, 1
      %s148 = scalar_select %p145, %s146, %s147
      %p151 = pneg %p145
      %p152 = scmp.eq.s32.totalorder %s26, 1
      %p153 = por %p151, %p152
      %p154 = scmp.ne.s32.totalorder %s146, %s149
      %p155 = scmp.eq.s32.totalorder %s26, 0
      %p156 = por %p154, %p155
      %p157 = scmp.ne.s32.totalorder %s146, %s149
      %p158 = scmp.eq.s32.totalorder %s31, 1
      %p159 = por %p157, %p158
      %p160 = scmp.ne.s32.totalorder %s149, %s150
      %p161 = scmp.eq.s32.totalorder %s31, 0
      %p162 = por %p160, %p161
      %p163 = scmp.ne.s32.totalorder %s149, %s150
      %p164 = scmp.eq.s32.totalorder %s32, 1
      %p165 = por %p163, %p164
      %p167 = scmp.ne.s32.totalorder %s150, %s166
      %p168 = scmp.eq.s32.totalorder %s32, 0
      %p169 = por %p167, %p168
      %s170 = ssub.s32 %s26, %s33
      %p171 = scmp.eq.s32.totalorder %s170, 0
      %s173 = sadd.s32 %s172, 1
      %s174 = scalar_select %p171, %s172, %s173
      %p177 = pneg %p171
      %p178 = scmp.eq.s32.totalorder %s26, 1
      %p179 = por %p177, %p178
      %p180 = scmp.ne.s32.totalorder %s172, %s175
      %p181 = scmp.eq.s32.totalorder %s26, 0
      %p182 = por %p180, %p181
      %p183 = scmp.ne.s32.totalorder %s172, %s175
      %p184 = scmp.eq.s32.totalorder %s31, 1
      %p185 = por %p183, %p184
      %p186 = scmp.ne.s32.totalorder %s175, %s176
      %p187 = scmp.eq.s32.totalorder %s31, 0
      %p188 = por %p186, %p187
      %p189 = scmp.ne.s32.totalorder %s175, %s176
      %p190 = scmp.eq.s32.totalorder %s32, 1
      %p191 = por %p189, %p190
      %p193 = scmp.ne.s32.totalorder %s176, %s192
      %p194 = scmp.eq.s32.totalorder %s32, 0
      %p195 = por %p193, %p194
      %s196 = ssub.s32 %s26, %s33
      %p197 = scmp.eq.s32.totalorder %s196, 0
      %s199 = sadd.s32 %s198, 1
      %s200 = scalar_select %p197, %s198, %s199
      %p203 = pneg %p197
      %p204 = scmp.eq.s32.totalorder %s26, 1
      %p205 = por %p203, %p204
      %p206 = scmp.ne.s32.totalorder %s198, %s201
      %p207 = scmp.eq.s32.totalorder %s26, 0
      %p208 = por %p206, %p207
      %p209 = scmp.ne.s32.totalorder %s198, %s201
      %p210 = scmp.eq.s32.totalorder %s31, 1
      %p211 = por %p209, %p210
      %p212 = scmp.ne.s32.totalorder %s201, %s202
      %p213 = scmp.eq.s32.totalorder %s31, 0
      %p214 = por %p212, %p213
      %p215 = scmp.ne.s32.totalorder %s201, %s202
      %p216 = scmp.eq.s32.totalorder %s32, 1
      %p217 = por %p215, %p216
      %p219 = scmp.ne.s32.totalorder %s202, %s218
      %p220 = scmp.eq.s32.totalorder %s32, 0
      %p221 = por %p219, %p220
      %s222 = ssub.s32 %s26, %s33
      %p223 = scmp.eq.s32.totalorder %s222, 0
      %s225 = sadd.s32 %s224, 1
      %s226 = scalar_select %p223, %s224, %s225
      %p229 = pneg %p223
      %p230 = scmp.eq.s32.totalorder %s26, 1
      %p231 = por %p229, %p230
      %p232 = scmp.ne.s32.totalorder %s224, %s227
      %p233 = scmp.eq.s32.totalorder %s26, 0
      %p234 = por %p232, %p233
      %p235 = scmp.ne.s32.totalorder %s224, %s227
      %p236 = scmp.eq.s32.totalorder %s31, 1
      %p237 = por %p235, %p236
      %p238 = scmp.ne.s32.totalorder %s227, %s228
      %p239 = scmp.eq.s32.totalorder %s31, 0
      %p240 = por %p238, %p239
      %p241 = scmp.ne.s32.totalorder %s227, %s228
      %p242 = scmp.eq.s32.totalorder %s32, 1
      %p243 = por %p241, %p242
      %p245 = scmp.ne.s32.totalorder %s228, %s244
      %p246 = scmp.eq.s32.totalorder %s32, 0
      %p247 = por %p245, %p246
      %s248 = ssub.s32 %s26, %s33
      %p249 = scmp.eq.s32.totalorder %s248, 0
      %s251 = sadd.s32 %s250, 1
      %s252 = scalar_select %p249, %s250, %s251
      %p255 = pneg %p249
      %p256 = scmp.eq.s32.totalorder %s26, 1
      %p257 = por %p255, %p256
      %p258 = scmp.ne.s32.totalorder %s250, %s253
      %p259 = scmp.eq.s32.totalorder %s26, 0
      %p260 = por %p258, %p259
      %p261 = scmp.ne.s32.totalorder %s250, %s253
      %p262 = scmp.eq.s32.totalorder %s31, 1
      %p263 = por %p261, %p262
      %p264 = scmp.ne.s32.totalorder %s253, %s254
      %p265 = scmp.eq.s32.totalorder %s31, 0
      %p266 = por %p264, %p265
      %p267 = scmp.ne.s32.totalorder %s253, %s254
      %p268 = scmp.eq.s32.totalorder %s32, 1
      %p269 = por %p267, %p268
      %p271 = scmp.ne.s32.totalorder %s254, %s270
      %p272 = scmp.eq.s32.totalorder %s32, 0
      %p273 = por %p271, %p272
      %p274 = scmp.le.s32.totalorder 1, %s26
      %p275 = scmp.lt.s32.totalorder %s26, 3
      %p276 = pnand %p274, %p275
      %p277 = pneg %p276
      // Predicated region
      $region9: #{tpu_custom_call.1} parent=5 // pred_check
        _
      $region10: #{tpu_custom_call.1} parent=5 // pred_check_branch
        %279 = sbr.rel (%p276) target = $region12
      $region11: #{tpu_custom_call.1} parent=5 // pred_region
        %s280 = ssub.s32 %s26, 1
        // Predicated region
        $region13: #{tpu_custom_call.1} parent=11 // pred_check
          %p281 = pneg %p47
        $region14: #{tpu_custom_call.1} parent=11 // pred_check_branch
          %283 = sbr.rel (%p281) target = $region16
        $region15: #{tpu_custom_call.1} parent=11 // pred_region
          _
        $region16: #{tpu_custom_call.1} parent=11 // pred_fallthru
          _
        // Predicated region
        $region17: #{tpu_custom_call.1} parent=11 // pred_check
          %p284 = pneg %p68
        $region18: #{tpu_custom_call.1} parent=11 // pred_check_branch
          %286 = sbr.rel (%p284) target = $region20
        $region19: #{tpu_custom_call.1} parent=11 // pred_region
          _
        $region20: #{tpu_custom_call.1} parent=11 // pred_fallthru
          _
        // Predicated region
        $region21: #{tpu_custom_call.1} parent=11 // pred_check
          %p287 = pneg %p89
        $region22: #{tpu_custom_call.1} parent=11 // pred_check_branch
          %289 = sbr.rel (%p287) target = $region24
        $region23: #{tpu_custom_call.1} parent=11 // pred_region
          _
        $region24: #{tpu_custom_call.1} parent=11 // pred_fallthru
          _
        // Predicated region
        $region25: #{tpu_custom_call.1} parent=11 // pred_check
          %p290 = pneg %p136
        $region26: #{tpu_custom_call.1} parent=11 // pred_check_branch
          %292 = sbr.rel (%p290) target = $region28
        $region27: #{tpu_custom_call.1} parent=11 // pred_region
          _
        $region28: #{tpu_custom_call.1} parent=11 // pred_fallthru
          _
      $region12: #{tpu_custom_call.1} parent=5 // pred_fallthru
        _
      %p293 = scmp.lt.s32.totalorder %s26, 2
      // Predicated region
      $region29: #{tpu_custom_call.1} parent=5 // pred_check
        %p294 = pneg %p293
      $region30: #{tpu_custom_call.1} parent=5 // pred_check_branch
        %296 = sbr.rel (%p294) target = $region32
      $region31: #{tpu_custom_call.1} parent=5 // pred_region
        // Predicated region
        $region33: #{tpu_custom_call.1} parent=31 // pred_check
          %p297 = pneg %p109
        $region34: #{tpu_custom_call.1} parent=31 // pred_check_branch
          %299 = sbr.rel (%p297) target = $region36
        $region35: #{tpu_custom_call.1} parent=31 // pred_region
          %s300 = smul.u32 16, %s26
          %p301 = scmp.lt.s32.totalorder %s300, 31
          %s302 = scalar_select %p301, %s300, 31
          %s303 = smul.addr %s302, 8
          %s304 = scalar_lea.vmem %s3, %s303
          %s305 = smul.u32 16, %s26
        $region36: #{tpu_custom_call.1} parent=31 // pred_fallthru
          _
      $region32: #{tpu_custom_call.1} parent=5 // pred_fallthru
        _
      %p306 = scmp.le.s32.totalorder 1, %s26
      %p307 = scmp.lt.s32.totalorder %s26, 3
      %p308 = pnand %p306, %p307
      %p309 = pneg %p308
      // Predicated region
      $region37: #{tpu_custom_call.1} parent=5 // pred_check
        _
      $region38: #{tpu_custom_call.1} parent=5 // pred_check_branch
        %311 = sbr.rel (%p308) target = $region40
      $region39: #{tpu_custom_call.1} parent=5 // pred_region
        %s312 = ssub.s32 %s26, 1
        %p313 = pneg %p47
        %p314 = pneg %p44
        %p315 = pneg %p68
        %p316 = pneg %p65
        %p317 = pneg %p89
        %p318 = pneg %p86
        %s319 = smul.u32 16, %s31
        %p320 = scmp.lt.s32.totalorder %s319, 31
        %s321 = scalar_select %p320, %s319, 31
        %s322 = smul.addr %s321, 8
        %s323 = scalar_lea.vmem %s3, %s322
        %p324 = pneg %p115
        %p325 = pneg %p112
        %p326 = pneg %p136
        %p327 = pneg %p133
        %p328 = pneg %p162
        %p329 = pneg %p159
        %s330 = sand.u32 %s149, 1
        %s331 = scalar_lea.sflag [#allocation4], %s330
        %s332 = sand.u32 %s149, 1
        %s333 = smul.addr %s332, 128
        %s334 = scalar_lea.vmem [#allocation3], %s333
        %p335 = pneg %p188
        %p336 = pneg %p185
        %s337 = sand.u32 %s31, 1
        %s338 = scalar_lea.sflag [#allocation6], %s337
        %s339 = sand.u32 %s175, 1
        %s340 = scalar_lea.vmem [#allocation5], %s339
        %p341 = pneg %p214
        %p342 = pneg %p211
        %s343 = sand.u32 %s31, 1
        %s344 = scalar_lea.sflag [#allocation6], %s343
        %s345 = sand.u32 %s201, 1
        %s346 = scalar_lea.vmem [#allocation7], %s345
        %p347 = pneg %p240
        %p348 = pneg %p237
        %s349 = sand.u32 %s31, 1
        %s350 = scalar_lea.sflag [#allocation9], %s349
        %s351 = sand.u32 %s227, 1
        %s352 = scalar_lea.vmem [#allocation8], %s351
        %p353 = pneg %p266
        %p354 = pneg %p263
        %s355 = sand.u32 %s31, 1
        %s356 = scalar_lea.sflag [#allocation9], %s355
        %s357 = sand.u32 %s253, 1
        %s358 = scalar_lea.vmem [#allocation10], %s357
        %s359 = smul.u32 16, %s31
        %p360 = scmp.lt.s32.totalorder %s359, 31
        %s361 = scalar_select %p360, %s359, 31
        %s362 = smul.addr %s361, 8
        %s363 = scalar_lea.vmem %s3, %s362
        %s364 = smul.u32 16, %s31
        %s365 = smul.u32 16, %s31
        %s367 = sld [smem:[#allocation2]]
        %v368 = vld [vmem:[%s363] sm:$0xff]
        %v369 = vld [vmem:[%s363 + $0x8] sm:$0xff]
        %v370 = vld [vmem:[%s363 + $0x10] sm:$0xff]
        %v371 = vld [vmem:[%s363 + $0x18] sm:$0xff]
        %v372 = vld [vmem:[%s363 + $0x20] sm:$0xff]
        %v373 = vld [vmem:[%s363 + $0x28] sm:$0xff]
        %v374 = vld [vmem:[%s363 + $0x30] sm:$0xff]
        %v375 = vld [vmem:[%s363 + $0x38] sm:$0xff]
        %v376 = vld [vmem:[%s363 + $0x40] sm:$0xff]
        %v377 = vld [vmem:[%s363 + $0x48] sm:$0xff]
        %v378 = vld [vmem:[%s363 + $0x50] sm:$0xff]
        %v379 = vld [vmem:[%s363 + $0x58] sm:$0xff]
        %v380 = vld [vmem:[%s363 + $0x60] sm:$0xff]
        %v381 = vld [vmem:[%s363 + $0x68] sm:$0xff]
        %v382 = vld [vmem:[%s363 + $0x70] sm:$0xff]
        %v383 = vld [vmem:[%s363 + $0x78] sm:$0xff]
        %v384 = vld [vmem:[%s1] sm:$0x1]
        %v386 = vlaneseq
        %v387 = vshrl.u32 %v386, 7
        %v388 = vsub.s32 0, %v387
        %v389 = vrot.slane %v384, %v388
        %v391 = vmul.f32 %v368, %v389
        %v392 = vmul.f32 %v369, %v389
        %v393 = vmul.f32 %v370, %v389
        %v394 = vmul.f32 %v371, %v389
        %v395 = vmul.f32 %v372, %v389
        %v396 = vmul.f32 %v373, %v389
        %v397 = vmul.f32 %v374, %v389
        %v398 = vmul.f32 %v375, %v389
        %v399 = vmul.f32 %v376, %v389
        %v400 = vmul.f32 %v377, %v389
        %v401 = vmul.f32 %v378, %v389
        %v402 = vmul.f32 %v379, %v389
        %v403 = vmul.f32 %v380, %v389
        %v404 = vmul.f32 %v381, %v389
        %v405 = vmul.f32 %v382, %v389
        %v406 = vmul.f32 %v383, %v389
        %v407 = vld [vmem:[%s2] sm:$0x1]
        %v409 = vlaneseq
        %v410 = vshrl.u32 %v409, 7
        %v411 = vsub.s32 0, %v410
        %v412 = vrot.slane %v407, %v411
        %v414 = vadd.f32 %v391, %v412
        %v415 = vadd.f32 %v392, %v412
        %v416 = vadd.f32 %v393, %v412
        %v417 = vadd.f32 %v394, %v412
        %v418 = vadd.f32 %v395, %v412
        %v419 = vadd.f32 %v396, %v412
        %v420 = vadd.f32 %v397, %v412
        %v421 = vadd.f32 %v398, %v412
        %v422 = vadd.f32 %v399, %v412
        %v423 = vadd.f32 %v400, %v412
        %v424 = vadd.f32 %v401, %v412
        %v425 = vadd.f32 %v402, %v412
        %v426 = vadd.f32 %v403, %v412
        %v427 = vadd.f32 %v404, %v412
        %v428 = vadd.f32 %v405, %v412
        %v429 = vadd.f32 %v406, %v412
        %v430 = vstv %s367
        %v431 = vmax.f32 %v414, %v430
        %v432 = vmax.f32 %v415, %v430
        %v433 = vmax.f32 %v416, %v430
        %v434 = vmax.f32 %v417, %v430
        %v435 = vmax.f32 %v418, %v430
        %v436 = vmax.f32 %v419, %v430
        %v437 = vmax.f32 %v420, %v430
        %v438 = vmax.f32 %v421, %v430
        %v439 = vmax.f32 %v422, %v430
        %v440 = vmax.f32 %v423, %v430
        %v441 = vmax.f32 %v424, %v430
        %v442 = vmax.f32 %v425, %v430
        %v443 = vmax.f32 %v426, %v430
        %v444 = vmax.f32 %v427, %v430
        %v445 = vmax.f32 %v428, %v430
        %v446 = vmax.f32 %v429, %v430
        %v447 = vround.ne.pseudo %v431
        %v448 = vround.ne.pseudo %v432
        %v449 = vround.ne.pseudo %v433
        %v450 = vround.ne.pseudo %v434
        %v451 = vround.ne.pseudo %v435
        %v452 = vround.ne.pseudo %v436
        %v453 = vround.ne.pseudo %v437
        %v454 = vround.ne.pseudo %v438
        %v455 = vround.ne.pseudo %v439
        %v456 = vround.ne.pseudo %v440
        %v457 = vround.ne.pseudo %v441
        %v458 = vround.ne.pseudo %v442
        %v459 = vround.ne.pseudo %v443
        %v460 = vround.ne.pseudo %v444
        %v461 = vround.ne.pseudo %v445
        %v462 = vround.ne.pseudo %v446
        %v463 = vpack.c.bf16 %v448, %v447
        %v464 = vpack.c.bf16 %v450, %v449
        %v465 = vpack.c.bf16 %v452, %v451
        %v466 = vpack.c.bf16 %v454, %v453
        %v467 = vpack.c.bf16 %v456, %v455
        %v468 = vpack.c.bf16 %v458, %v457
        %v469 = vpack.c.bf16 %v460, %v459
        %v470 = vpack.c.bf16 %v462, %v461
        %v471 = vld [vmem:[%s4] sm:$0xf]
        %vm472 = vcmask 56320
        %v474 = vsel %vm472, %v463, 0
        %v477 = vsel %vm472, %v464, 0
        %v480 = vsel %vm472, %v465, 0
        %v483 = vsel %vm472, %v466, 0
        %v486 = vsel %vm472, %v467, 0
        %v489 = vsel %vm472, %v468, 0
        %v492 = vsel %vm472, %v469, 0
        %v495 = vsel %vm472, %v470, 0
        %vm497 = vcmask 1042432
        %vm498 = vcmask 1043456
        %v499 = vsel %vm497, 4294967295, 65535
        %v500 = vsel %vm498, %v499, 0
        %v502 = vand.u32 %v471, %v500
        %504 = vmatprep.subr.bf16.mxu0 0
        %505 = vmatpush1.bf16.msra.mxu0 0
        %506 = vmatprep.subr.bf16.mxu0 0
        %507 = vmatpush1.bf16.msra.mxu0 0
        %508 = vmatprep.subr.bf16.mxu0 0
        %509 = vmatpush1.bf16.msra.mxu0 0
        %510 = vmatprep.subr.bf16.mxu0 0
        %511 = vmatpush1.bf16.msra.mxu0 0
        %512 = vmatprep.subr.bf16.mxu0 0
        %513 = vmatpush1.bf16.msra.mxu0 0
        %514 = vmatprep.subr.bf16.mxu0 0
        %515 = vmatpush1.bf16.msra.mxu0 0
        %516 = vmatprep.subr.bf16.mxu0 0
        %517 = vmatpush1.bf16.msra.mxu0 0
        %518 = vmatprep.subr.bf16.mxu0 0
        %519 = vmatpush1.bf16.msra.mxu0 %v502
        %520 = vmatprep.subr.bf16.mxu0 0
        %521 = vmatpush2.bf16.msra.mxu0 0
        %522 = vmatprep.subr.bf16.mxu0 0
        %523 = vmatpush2.bf16.msra.mxu0 0
        %524 = vmatprep.subr.bf16.mxu0 0
        %525 = vmatpush2.bf16.msra.mxu0 0
        %526 = vmatprep.subr.bf16.mxu0 0
        %527 = vmatpush2.bf16.msra.mxu0 0
        %528 = vmatprep.subr.bf16.mxu0 0
        %529 = vmatpush2.bf16.msra.mxu0 0
        %530 = vmatprep.subr.bf16.mxu0 0
        %531 = vmatpush2.bf16.msra.mxu0 0
        %532 = vmatprep.subr.bf16.mxu0 0
        %533 = vmatpush2.bf16.msra.mxu0 0
        %534 = vmatprep.subr.bf16.mxu0 0
        %535 = vmatpush2.bf16.msra.mxu0 0
        %536 = vmatprep.mubr.bf16.mxu0 0
        %537 = vmatmul.mubr.bf16.gmra.mxu0 %v474
        %v538 = vpop.f32.mrf.mxu0
        %v539 = vadd.f32 0.0, %v538
        %v540 = vpop.f32.mrf.mxu0
        %v541 = vpop.f32.mrf.mxu0
        %v542 = vadd.f32 0.0, %v541
        %v543 = vpop.f32.mrf.mxu0
        %544 = vmatprep.mubr.bf16.mxu0 0
        %545 = vmatmul.mubr.bf16.gmra.mxu0 %v477
        %v546 = vpop.f32.mrf.mxu0
        %v547 = vadd.f32 0.0, %v546
        %v548 = vpop.f32.mrf.mxu0
        %v549 = vpop.f32.mrf.mxu0
        %v550 = vadd.f32 0.0, %v549
        %v551 = vpop.f32.mrf.mxu0
        %552 = vmatprep.mubr.bf16.mxu0 0
        %553 = vmatmul.mubr.bf16.gmra.mxu0 %v480
        %v554 = vpop.f32.mrf.mxu0
        %v555 = vadd.f32 0.0, %v554
        %v556 = vpop.f32.mrf.mxu0
        %v557 = vpop.f32.mrf.mxu0
        %v558 = vadd.f32 0.0, %v557
        %v559 = vpop.f32.mrf.mxu0
        %560 = vmatprep.mubr.bf16.mxu0 0
        %561 = vmatmul.mubr.bf16.gmra.mxu0 %v483
        %v562 = vpop.f32.mrf.mxu0
        %v563 = vadd.f32 0.0, %v562
        %v564 = vpop.f32.mrf.mxu0
        %v565 = vpop.f32.mrf.mxu0
        %v566 = vadd.f32 0.0, %v565
        %v567 = vpop.f32.mrf.mxu0
        %568 = vmatprep.mubr.bf16.mxu0 0
        %569 = vmatmul.mubr.bf16.gmra.mxu0 %v486
        %v570 = vpop.f32.mrf.mxu0
        %v571 = vadd.f32 0.0, %v570
        %v572 = vpop.f32.mrf.mxu0
        %v573 = vpop.f32.mrf.mxu0
        %v574 = vadd.f32 0.0, %v573
        %v575 = vpop.f32.mrf.mxu0
        %576 = vmatprep.mubr.bf16.mxu0 0
        %577 = vmatmul.mubr.bf16.gmra.mxu0 %v489
        %v578 = vpop.f32.mrf.mxu0
        %v579 = vadd.f32 0.0, %v578
        %v580 = vpop.f32.mrf.mxu0
        %v581 = vpop.f32.mrf.mxu0
        %v582 = vadd.f32 0.0, %v581
        %v583 = vpop.f32.mrf.mxu0
        %584 = vmatprep.mubr.bf16.mxu0 0
        %585 = vmatmul.mubr.bf16.gmra.mxu0 %v492
        %v586 = vpop.f32.mrf.mxu0
        %v587 = vadd.f32 0.0, %v586
        %v588 = vpop.f32.mrf.mxu0
        %v589 = vpop.f32.mrf.mxu0
        %v590 = vadd.f32 0.0, %v589
        %v591 = vpop.f32.mrf.mxu0
        %592 = vmatprep.mubr.bf16.mxu0 0
        %593 = vmatmul.mubr.bf16.gmra.mxu0 %v495
        %v594 = vpop.f32.mrf.mxu0
        %v595 = vadd.f32 0.0, %v594
        %v596 = vpop.f32.mrf.mxu0
        %v597 = vpop.f32.mrf.mxu0
        %v598 = vadd.f32 0.0, %v597
        %v599 = vpop.f32.mrf.mxu0
        %600 = vdwg.mxu0
        %601 = vst [vmem:[%s334] sm:$0xff] %v539
        %602 = vst [vmem:[%s334 + $0x8] sm:$0xff] %v542
        %603 = vst [vmem:[%s334 + $0x10] sm:$0xff] %v547
        %604 = vst [vmem:[%s334 + $0x18] sm:$0xff] %v550
        %605 = vst [vmem:[%s334 + $0x20] sm:$0xff] %v555
        %606 = vst [vmem:[%s334 + $0x28] sm:$0xff] %v558
        %607 = vst [vmem:[%s334 + $0x30] sm:$0xff] %v563
        %608 = vst [vmem:[%s334 + $0x38] sm:$0xff] %v566
        %609 = vst [vmem:[%s334 + $0x40] sm:$0xff] %v571
        %610 = vst [vmem:[%s334 + $0x48] sm:$0xff] %v574
        %611 = vst [vmem:[%s334 + $0x50] sm:$0xff] %v579
        %612 = vst [vmem:[%s334 + $0x58] sm:$0xff] %v582
        %613 = vst [vmem:[%s334 + $0x60] sm:$0xff] %v587
        %614 = vst [vmem:[%s334 + $0x68] sm:$0xff] %v590
        %615 = vst [vmem:[%s334 + $0x70] sm:$0xff] %v595
        %616 = vst [vmem:[%s334 + $0x78] sm:$0xff] %v598
        %v617 = vadd.f32 %v539, %v542
        %v618 = vadd.f32 %v617, %v547
        %v619 = vadd.f32 %v618, %v550
        %v620 = vadd.f32 %v619, %v555
        %v621 = vadd.f32 %v620, %v558
        %v622 = vadd.f32 %v621, %v563
        %v623 = vadd.f32 %v622, %v566
        %v624 = vadd.f32 %v623, %v571
        %v625 = vadd.f32 %v624, %v574
        %v626 = vadd.f32 %v625, %v579
        %v627 = vadd.f32 %v626, %v582
        %v628 = vadd.f32 %v627, %v587
        %v629 = vadd.f32 %v628, %v590
        %v630 = vadd.f32 %v629, %v595
        %v631 = vadd.f32 %v630, %v598
        %v632 = vrot.slane %v631, 4
        %v633 = vadd.f32 %v631, %v632
        %v634 = vrot.slane %v633, 2
        %v635 = vadd.f32 %v633, %v634
        %v636 = vrot.slane %v635, 1
        %v637 = vadd.f32 %v635, %v636
        %v638 = vmul.f32 %v637, 0.0078125
        %v639 = vsub.f32 %v539, %v638
        %v640 = vsub.f32 %v542, %v638
        %v641 = vsub.f32 %v547, %v638
        %v642 = vsub.f32 %v550, %v638
        %v643 = vsub.f32 %v555, %v638
        %v644 = vsub.f32 %v558, %v638
        %v645 = vsub.f32 %v563, %v638
        %v646 = vsub.f32 %v566, %v638
        %v647 = vsub.f32 %v571, %v638
        %v648 = vsub.f32 %v574, %v638
        %v649 = vsub.f32 %v579, %v638
        %v650 = vsub.f32 %v582, %v638
        %v651 = vsub.f32 %v587, %v638
        %v652 = vsub.f32 %v590, %v638
        %v653 = vsub.f32 %v595, %v638
        %v654 = vsub.f32 %v598, %v638
        %655 = vst [vmem:[%s340] sm:$0x1] %v637
        %v656 = vmul.f32 %v639, %v639
        %v657 = vmul.f32 %v640, %v640
        %v658 = vmul.f32 %v641, %v641
        %v659 = vmul.f32 %v642, %v642
        %v660 = vmul.f32 %v643, %v643
        %v661 = vmul.f32 %v644, %v644
        %v662 = vmul.f32 %v645, %v645
        %v663 = vmul.f32 %v646, %v646
        %v664 = vmul.f32 %v647, %v647
        %v665 = vmul.f32 %v648, %v648
        %v666 = vmul.f32 %v649, %v649
        %v667 = vmul.f32 %v650, %v650
        %v668 = vmul.f32 %v651, %v651
        %v669 = vmul.f32 %v652, %v652
        %v670 = vmul.f32 %v653, %v653
        %v671 = vmul.f32 %v654, %v654
        %v672 = vadd.f32 %v656, %v657
        %v673 = vadd.f32 %v672, %v658
        %v674 = vadd.f32 %v673, %v659
        %v675 = vadd.f32 %v674, %v660
        %v676 = vadd.f32 %v675, %v661
        %v677 = vadd.f32 %v676, %v662
        %v678 = vadd.f32 %v677, %v663
        %v679 = vadd.f32 %v678, %v664
        %v680 = vadd.f32 %v679, %v665
        %v681 = vadd.f32 %v680, %v666
        %v682 = vadd.f32 %v681, %v667
        %v683 = vadd.f32 %v682, %v668
        %v684 = vadd.f32 %v683, %v669
        %v685 = vadd.f32 %v684, %v670
        %v686 = vadd.f32 %v685, %v671
        %v687 = vrot.slane %v686, 4
        %v688 = vadd.f32 %v686, %v687
        %v689 = vrot.slane %v688, 2
        %v690 = vadd.f32 %v688, %v689
        %v691 = vrot.slane %v690, 1
        %v692 = vadd.f32 %v690, %v691
        %693 = vst [vmem:[%s346] sm:$0x1] %v692
        %v694 = vmin.f32 %v539, %v555
        %v695 = vmin.f32 %v542, %v558
        %v696 = vmin.f32 %v547, %v563
        %v697 = vmin.f32 %v550, %v566
        %v698 = vmin.f32 %v694, %v571
        %v699 = vmin.f32 %v695, %v574
        %v700 = vmin.f32 %v696, %v579
        %v701 = vmin.f32 %v697, %v582
        %v702 = vmin.f32 %v698, %v587
        %v703 = vmin.f32 %v699, %v590
        %v704 = vmin.f32 %v700, %v595
        %v705 = vmin.f32 %v701, %v598
        %v706 = vmin.f32 %v702, %v703
        %v707 = vmin.f32 %v704, %v705
        %v708 = vmin.f32 %v706, %v707
        %v709 = vrot.slane %v708, 4
        %v710 = vmin.f32 %v708, %v709
        %v711 = vrot.slane %v710, 2
        %v712 = vmin.f32 %v710, %v711
        %v713 = vrot.slane %v712, 1
        %v714 = vmin.f32 %v712, %v713
        %715 = vst [vmem:[%s352] sm:$0x1] %v714
        %v716 = vmax.f32 %v539, %v555
        %v717 = vmax.f32 %v542, %v558
        %v718 = vmax.f32 %v547, %v563
        %v719 = vmax.f32 %v550, %v566
        %v720 = vmax.f32 %v716, %v571
        %v721 = vmax.f32 %v717, %v574
        %v722 = vmax.f32 %v718, %v579
        %v723 = vmax.f32 %v719, %v582
        %v724 = vmax.f32 %v720, %v587
        %v725 = vmax.f32 %v721, %v590
        %v726 = vmax.f32 %v722, %v595
        %v727 = vmax.f32 %v723, %v598
        %v728 = vmax.f32 %v724, %v725
        %v729 = vmax.f32 %v726, %v727
        %v730 = vmax.f32 %v728, %v729
        %v731 = vrot.slane %v730, 4
        %v732 = vmax.f32 %v730, %v731
        %v733 = vrot.slane %v732, 2
        %v734 = vmax.f32 %v732, %v733
        %v735 = vrot.slane %v734, 1
        %v736 = vmax.f32 %v734, %v735
        %737 = vst [vmem:[%s358] sm:$0x1] %v736
        %s738 = sand.u32 %s149, 1
        %s739 = scalar_lea.sflag [#allocation4], %s738
        %s740 = sand.u32 %s149, 1
        %s741 = smul.addr %s740, 128
        %s742 = scalar_lea.vmem [#allocation3], %s741
        %s743 = sand.u32 %s31, 1
        %s744 = scalar_lea.sflag [#allocation6], %s743
        %s745 = sand.u32 %s175, 1
        %s746 = scalar_lea.vmem [#allocation5], %s745
        %s747 = sand.u32 %s31, 1
        %s748 = scalar_lea.sflag [#allocation6], %s747
        %s749 = sand.u32 %s201, 1
        %s750 = scalar_lea.vmem [#allocation7], %s749
        %s751 = sand.u32 %s31, 1
        %s752 = scalar_lea.sflag [#allocation9], %s751
        %s753 = sand.u32 %s227, 1
        %s754 = scalar_lea.vmem [#allocation8], %s753
        %s755 = sand.u32 %s31, 1
        %s756 = scalar_lea.sflag [#allocation9], %s755
        %s757 = sand.u32 %s253, 1
        %s758 = scalar_lea.vmem [#allocation10], %s757
        // Predicated region
        $region41: #{tpu_custom_call.1} parent=39 // pred_check
          %p759 = pneg %p159
        $region42: #{tpu_custom_call.1} parent=39 // pred_check_branch
          %761 = sbr.rel (%p759) target = $region44
        $region43: #{tpu_custom_call.1} parent=39 // pred_region
          %s762 = smul.u32 16, %s31
          %s764 = ssub.s32 2048, 2048
          %765 = vsyncadd %s739, %s764
          %s766 = smul.addr %s762, 128
          %s767 = scalar_lea.hbm %s5, %s766
          %s768 = sshll.u32 %s742, 4
          %s769 = int_to_ptr.vmem [resolvable:$true] %s768
          %774 = dma.vmem_to_hbm [thread:$0]  %s769, 2048, %s767, %s739, 128, 128, 8
        $region44: #{tpu_custom_call.1} parent=39 // pred_fallthru
          _
        // Predicated region
        $region45: #{tpu_custom_call.1} parent=39 // pred_check
          %p775 = pneg %p185
        $region46: #{tpu_custom_call.1} parent=39 // pred_check_branch
          %777 = sbr.rel (%p775) target = $region48
        $region47: #{tpu_custom_call.1} parent=39 // pred_region
          %s779 = ssub.s32 16, 16
          %780 = vsyncadd %s744, %s779
          %s781 = smul.addr %s31, 16
          %s782 = scalar_lea.hbm %s6, %s781
          %s784 = sshll.u32 %s746, 4
          %s785 = int_to_ptr.vmem [resolvable:$true] %s784
          %787 = dma.vmem_to_hbm [thread:$0]  %s785, 16, %s782, %s744
        $region48: #{tpu_custom_call.1} parent=39 // pred_fallthru
          _
        // Predicated region
        $region49: #{tpu_custom_call.1} parent=39 // pred_check
          %p788 = pneg %p211
        $region50: #{tpu_custom_call.1} parent=39 // pred_check_branch
          %790 = sbr.rel (%p788) target = $region52
        $region51: #{tpu_custom_call.1} parent=39 // pred_region
          %s792 = ssub.s32 16, 16
          %793 = vsyncadd %s748, %s792
          %s794 = smul.addr %s31, 16
          %s795 = scalar_lea.hbm %s7, %s794
          %s797 = sshll.u32 %s750, 4
          %s798 = int_to_ptr.vmem [resolvable:$true] %s797
          %800 = dma.vmem_to_hbm [thread:$0]  %s798, 16, %s795, %s748
        $region52: #{tpu_custom_call.1} parent=39 // pred_fallthru
          _
        // Predicated region
        $region53: #{tpu_custom_call.1} parent=39 // pred_check
          %p801 = pneg %p237
        $region54: #{tpu_custom_call.1} parent=39 // pred_check_branch
          %803 = sbr.rel (%p801) target = $region56
        $region55: #{tpu_custom_call.1} parent=39 // pred_region
          %s805 = ssub.s32 16, 16
          %806 = vsyncadd %s752, %s805
          %s807 = smul.addr %s31, 16
          %s808 = scalar_lea.hbm %s8, %s807
          %s810 = sshll.u32 %s754, 4
          %s811 = int_to_ptr.vmem [resolvable:$true] %s810
          %813 = dma.vmem_to_hbm [thread:$0]  %s811, 16, %s808, %s752
        $region56: #{tpu_custom_call.1} parent=39 // pred_fallthru
          _
        // Predicated region
        $region57: #{tpu_custom_call.1} parent=39 // pred_check
          %p814 = pneg %p263
        $region58: #{tpu_custom_call.1} parent=39 // pred_check_branch
          %816 = sbr.rel (%p814) target = $region60
        $region59: #{tpu_custom_call.1} parent=39 // pred_region
          %s818 = ssub.s32 16, 16
          %819 = vsyncadd %s756, %s818
          %s820 = smul.addr %s31, 16
          %s821 = scalar_lea.hbm %s9, %s820
          %s823 = sshll.u32 %s758, 4
          %s824 = int_to_ptr.vmem [resolvable:$true] %s823
          %826 = dma.vmem_to_hbm [thread:$0]  %s824, 16, %s821, %s756
        $region60: #{tpu_custom_call.1} parent=39 // pred_fallthru
          _
      $region40: #{tpu_custom_call.1} parent=5 // pred_fallthru
        _
      %p827 = scmp.le.s32.totalorder 2, %s26
      // Predicated region
      $region61: #{tpu_custom_call.1} parent=5 // pred_check
        %p828 = pneg %p827
      $region62: #{tpu_custom_call.1} parent=5 // pred_check_branch
        %830 = sbr.rel (%p828) target = $region64
      $region63: #{tpu_custom_call.1} parent=5 // pred_region
        %s831 = ssub.s32 %s26, 2
        // Predicated region
        $region65: #{tpu_custom_call.1} parent=63 // pred_check
          %p832 = pneg %p165
        $region66: #{tpu_custom_call.1} parent=63 // pred_check_branch
          %834 = sbr.rel (%p832) target = $region68
        $region67: #{tpu_custom_call.1} parent=63 // pred_region
          %s835 = sand.u32 %s150, 1
          %s836 = scalar_lea.sflag [#allocation4], %s835
          %s837 = sand.u32 %s150, 1
          %s838 = smul.addr %s837, 128
          %s839 = scalar_lea.vmem [#allocation3], %s838
          %840 = dma.done %s836, 2048
        $region68: #{tpu_custom_call.1} parent=63 // pred_fallthru
          _
        // Predicated region
        $region69: #{tpu_custom_call.1} parent=63 // pred_check
          %p841 = pneg %p191
        $region70: #{tpu_custom_call.1} parent=63 // pred_check_branch
          %843 = sbr.rel (%p841) target = $region72
        $region71: #{tpu_custom_call.1} parent=63 // pred_region
          %s844 = sand.u32 %s32, 1
          %s845 = scalar_lea.sflag [#allocation6], %s844
          %s846 = sand.u32 %s176, 1
          %s847 = scalar_lea.vmem [#allocation5], %s846
          %848 = dma.done %s845, 16
        $region72: #{tpu_custom_call.1} parent=63 // pred_fallthru
          _
        // Predicated region
        $region73: #{tpu_custom_call.1} parent=63 // pred_check
          %p849 = pneg %p217
        $region74: #{tpu_custom_call.1} parent=63 // pred_check_branch
          %851 = sbr.rel (%p849) target = $region76
        $region75: #{tpu_custom_call.1} parent=63 // pred_region
          %s852 = sand.u32 %s32, 1
          %s853 = scalar_lea.sflag [#allocation6], %s852
          %s854 = sand.u32 %s202, 1
          %s855 = scalar_lea.vmem [#allocation7], %s854
          %856 = dma.done %s853, 16
        $region76: #{tpu_custom_call.1} parent=63 // pred_fallthru
          _
        // Predicated region
        $region77: #{tpu_custom_call.1} parent=63 // pred_check
          %p857 = pneg %p243
        $region78: #{tpu_custom_call.1} parent=63 // pred_check_branch
          %859 = sbr.rel (%p857) target = $region80
        $region79: #{tpu_custom_call.1} parent=63 // pred_region
          %s860 = sand.u32 %s32, 1
          %s861 = scalar_lea.sflag [#allocation9], %s860
          %s862 = sand.u32 %s228, 1
          %s863 = scalar_lea.vmem [#allocation8], %s862
          %864 = dma.done %s861, 16
        $region80: #{tpu_custom_call.1} parent=63 // pred_fallthru
          _
        // Predicated region
        $region81: #{tpu_custom_call.1} parent=63 // pred_check
          %p865 = pneg %p269
        $region82: #{tpu_custom_call.1} parent=63 // pred_check_branch
          %867 = sbr.rel (%p865) target = $region84
        $region83: #{tpu_custom_call.1} parent=63 // pred_region
          %s868 = sand.u32 %s32, 1
          %s869 = scalar_lea.sflag [#allocation9], %s868
          %s870 = sand.u32 %s254, 1
          %s871 = scalar_lea.vmem [#allocation10], %s870
          %872 = dma.done %s869, 16
        $region84: #{tpu_custom_call.1} parent=63 // pred_fallthru
          _
      $region64: #{tpu_custom_call.1} parent=5 // pred_fallthru
        _
    $region6: #{tpu_custom_call.1} parent=1 // loop_footer
      %s30 = sadd.s32 1, %s26
    $region7: #{tpu_custom_call.1} parent=1 // loop_footer_branch
      %25 = sbr.rel target = $region3
    $region8: #{tpu_custom_call.1} parent=1 // loop_exit
      _
    %873 = vsyncpa [#allocation4], 1
    %s874 = scalar_lea.sflag [#allocation4], 1
    %875 = vsyncpa %s874, 1
    %876 = vsyncpa [#allocation6], 1
    %s877 = scalar_lea.sflag [#allocation6], 1
    %878 = vsyncpa %s877, 1
    %879 = vsyncpa [#allocation9], 1
    %s880 = scalar_lea.sflag [#allocation9], 1
    %881 = vsyncpa %s880, 1

</llo_original>
